<compile_context>
chip_gen: v6e
topology: v6e:2x2x1
jax: 0.10.0
libtpu: 0.0.40
codegen_flags: <defaults>
</compile_context>

<pallas_src>
import jax
import jax.numpy as jnp
from jax.experimental import pallas as pl
from jax.experimental.pallas import tpu as pltpu


# ----------------------------- small helpers --------------------------------

def _round_up(x, m):
    return ((x + m - 1) // m) * m


def _pad_feature(d):
    # 256-alignment feeds the 2x256^2 MXU on v6e/v7x; tiny dims only need lane width.
    return _round_up(d, 256) if d > 128 else _round_up(d, 128)


def _divisor_tile(total_p, req):
    """Largest multiple of 128 that divides total_p (a multiple of 128) and is <= req."""
    base = total_p // 128
    dmax = max(1, min(base, max(req, 128) // 128))
    for d in range(dmax, 0, -1):
        if base % d == 0:
            return d * 128
    return 128


def _vmem_capacity_bytes():
    try:
        return int(pltpu.get_tpu_info().vmem_capacity_bytes)
    except Exception:
        return 64 << 20  # conservative fallback: v7x per-TensorCore VMEM


def _vmem_bytes(tm, tn, th, grid_h, mt_p, hid_p, out_isz):
    w1_bufs = 1 if grid_h == 1 else 2          # resident W1 is single-buffered
    return (2 * tm * mt_p * 2                  # x tile (bf16, double-buffered)
            + w1_bufs * mt_p * th * 2          # W1 block (bf16)
            + w1_bufs * th * 4                 # b1 block (f32)
            + 2 * th * tn * 2                  # W2 block (bf16, double-buffered)
            + 2 * tn * 4                       # b2 block (f32)
            + 2 * tm * tn * out_isz            # out tile (double-buffered)
            + grid_h * tm * th * 2             # h cache (bf16) == tm * hid_p * 2
            + tm * tn * 4                      # acc scratch (f32)
            + tm * th * 4)                     # f32 intermediate of the first matmul


def _choose_tiles(M, mt_p, hid_p, llm_p, out_isz, tm_req, tn_req, th_req, budget):
    tn = _divisor_tile(llm_p, tn_req)
    tm_top = min(tm_req, _round_up(M, 8))
    tm_cands = []
    for t in (tm_top, 512, 256, 128, 64, 32, 16, 8):
        t = min(t, tm_top)
        if t >= 8 and t not in tm_cands:
            tm_cands.append(t)
    if th_req is not None:
        th_cands = [_divisor_tile(hid_p, th_req)]
    else:
        th_cands = [hid_p]                     # resident-W1 path preferred
        for t in (4096, 2048, 1024, 512, 256, 128):
            if t < hid_p:
                d = _divisor_tile(hid_p, t)
                if d not in th_cands:
                    th_cands.append(d)
    # Prefer large tm (W2 stream intensity) over resident W1 (W1 is usually the smaller
    # matrix), so for a given tm exhaust hidden-chunk options before shrinking tm.
    for tm in tm_cands:
        for th in th_cands:
            grid_h = hid_p // th
            if _vmem_bytes(tm, tn, th, grid_h, mt_p, hid_p, out_isz) + (2 << 20) <= budget:
                return tm, tn, th
    return tm_cands[-1], tn, th_cands[-1]      # last resort; compiler may spill


# --------------------------------- kernel ------------------------------------

def _mlp_kernel(x_ref, w1_ref, b1_ref, w2_ref, b2_ref, o_ref, h_ref, acc_ref):
    # grid = (row tiles i, llm tiles j, hidden chunks k); k is the reduction (innermost).
    j = pl.program_id(1)
    k = pl.program_id(2)
    nk = pl.num_programs(2)

    @pl.when(k == 0)
    def _():
        acc_ref[...] = jnp.zeros_like(acc_ref)

    # First matmul + bias + ReLU: computed once per (row tile, hidden chunk) at the first
    # llm tile only, then reused from the bf16 VMEM h-cache for every other j.
    # NOTE: this requires axes 1 and 2 to be "arbitrary" (same core, j==0 first).
    @pl.when(j == 0)
    def _():
        h = jnp.dot(x_ref[...], w1_ref[...], preferred_element_type=jnp.float32)
        h = jnp.maximum(h + b1_ref[...], 0.0)          # bias + ReLU in f32 (VPU)
        h_ref[k] = h.astype(h_ref.dtype)               # stage bf16 for the MXU

    acc_ref[...] += jnp.dot(h_ref[k], w2_ref[...], preferred_element_type=jnp.float32)

    @pl.when(k == nk - 1)
    def _():
        o_ref[...] = (acc_ref[...] + b2_ref[...]).astype(o_ref.dtype)


# ------------------------------- host wrappers --------------------------------

def prepare_mapping_weights(params):
    """Pad + cast the Mapping weights once (hoisted out of the per-call path)."""
    w1 = jnp.asarray(params["w1"])
    b1 = jnp.asarray(params["b1"])
    w2 = jnp.asarray(params["w2"])
    b2 = jnp.asarray(params["b2"])
    mt_dim, hidden = w1.shape
    llm_dim = w2.shape[1]
    mt_p, hid_p = _pad_feature(mt_dim), _pad_feature(hidden)
    llm_p = _round_up(llm_dim, 128)            # lane-dense only; tn will divide llm_p
    w1p = jnp.pad(w1.astype(jnp.bfloat16), ((0, mt_p - mt_dim), (0, hid_p - hidden)))
    b1p = jnp.pad(b1.astype(jnp.float32), (0, hid_p - hidden)).reshape(1, hid_p)
    w2p = jnp.pad(w2.astype(jnp.bfloat16), ((0, hid_p - hidden), (0, llm_p - llm_dim)))
    b2p = jnp.pad(b2.astype(jnp.float32), (0, llm_p - llm_dim)).reshape(1, llm_p)
    return {"w1": w1p, "b1": b1p, "w2": w2p, "b2": b2p,
            "dims": (mt_dim, hidden, llm_dim)}


def mapping_forward(hidden_states, prepared, *, tm=512, tn=512, th=None, out_dtype=None):
    """hidden_states: [..., mt_dim] -> [..., llm_dim] (Mapping.forward)."""
    w1p, b1p, w2p, b2p = prepared["w1"], prepared["b1"], prepared["w2"], prepared["b2"]
    mt_dim, hidden, llm_dim = prepared["dims"]
    assert hidden_states.shape[-1] == mt_dim

    lead = hidden_states.shape[:-1]
    M = 1
    for d in lead:
        M *= d

    mt_p, hid_p = w1p.shape
    llm_p = w2p.shape[1]
    out_dtype = hidden_states.dtype if out_dtype is None else jnp.dtype(out_dtype)
    out_isz = jnp.dtype(out_dtype).itemsize

    cap = _vmem_capacity_bytes()
    budget = int(cap * 0.88)
    tm, tn, th = _choose_tiles(M, mt_p, hid_p, llm_p, out_isz, tm, tn, th, budget)

    M_p = _round_up(M, tm)
    grid_m = M_p // tm
    # Small-M megacore help: give the second TensorCore its own row tile when possible.
    if grid_m == 1 and M > 128:
        tm = _round_up(pl.cdiv(M, 2), 8)
        M_p = _round_up(M, tm)
        grid_m = M_p // tm
    grid_n = llm_p // tn
    grid_h = hid_p // th
    single_w1 = grid_h == 1

    # TODO(synk): with allow_input_fusion the cast/pad of x could be folded into the
    # pallas_call instead of materializing a padded bf16 copy in HBM.
    x2d = hidden_states.reshape(M, mt_dim).astype(jnp.bfloat16)
    x2d = jnp.pad(x2d, ((0, M_p - M), (0, mt_p - mt_dim)))

    # When the hidden dim is tiled, park W1/b1 on their last chunk for j > 0 so the
    # resident chunk is never re-fetched: W1 HBM traffic = one full read per row tile.
    def w1_map(i, j, k, _gh=grid_h):
        return (0, jnp.where(j == 0, k, _gh - 1))

    if single_w1:
        w1_spec = pl.BlockSpec((mt_p, th), w1_map, pipeline_mode=pl.Buffered(1))
        b1_spec = pl.BlockSpec((1, th), w1_map, pipeline_mode=pl.Buffered(1))
    else:
        w1_spec = pl.BlockSpec((mt_p, th), w1_map)
        b1_spec = pl.BlockSpec((1, th), w1_map)

    est = _vmem_bytes(tm, tn, th, grid_h, mt_p, hid_p, out_isz)
    vmem_limit = min(int(cap * 0.92), max(est + (4 << 20), 32 << 20))

    cost = pl.CostEstimate(
        flops=2 * M_p * mt_p * hid_p + 2 * M_p * hid_p * llm_p,
        transcendentals=0,
        bytes_accessed=(M_p * mt_p * 2                                   # x read
                        + (1 if single_w1 else grid_m) * mt_p * hid_p * 2  # W1 stream
                        + grid_m * hid_p * llm_p * 2                     # W2 per row tile
                        + hid_p * 4 + llm_p * 4                          # biases
                        + M_p * llm_p * out_isz),                        # output write
    )

    out2d = pl.pallas_call(
        _mlp_kernel,
        out_shape=jax.ShapeDtypeStruct((M_p, llm_p), out_dtype),
        grid_spec=pltpu.PrefetchScalarGridSpec(
            num_scalar_prefetch=0,
            grid=(grid_m, grid_n, grid_h),
            in_specs=[
                pl.BlockSpec((tm, mt_p), lambda i, j, k: (i, 0)),   # x row tile
                w1_spec,                                            # W1 (resident / chunk)
                b1_spec,                                            # b1
                pl.BlockSpec((th, tn), lambda i, j, k: (k, j)),     # W2 tile
                pl.BlockSpec((1, tn), lambda i, j, k: (0, j)),      # b2 tile
            ],
            out_specs=pl.BlockSpec((tm, tn), lambda i, j, k: (i, j)),
            scratch_shapes=[
                pltpu.VMEM((grid_h, tm, th), jnp.bfloat16),   # h cache, reused across j
                pltpu.VMEM((tm, tn), jnp.float32),            # output accumulator
            ],
        ),
        compiler_params=pltpu.CompilerParams(
            # Only axis 0 may be parallel: the h-cache written at j == 0 and the k
            # reduction require axes 1 and 2 to run in order on one core.
            dimension_semantics=("parallel", "arbitrary", "arbitrary"),
            vmem_limit_bytes=int(vmem_limit),
        ),
        cost_estimate=cost,
    )(x2d, w1p, b1p, w2p, b2p)

    return out2d[:M, :llm_dim].reshape(*lead, llm_dim)


def init_mapping_params(key, mt_dim, llm_dim, dtype=jnp.float32):
    hidden = 2 * mt_dim
    k1, k2, k3, k4 = jax.random.split(key, 4)
    # PyTorch-Linear-like uniform init: U(-1/sqrt(fan_in), 1/sqrt(fan_in))
    s1 = 1.0 / jnp.sqrt(mt_dim)
    s2 = 1.0 / jnp.sqrt(hidden)
    return {
        "w1": jax.random.uniform(k1, (mt_dim, hidden), dtype, -s1, s1),
        "b1": jax.random.uniform(k2, (hidden,), dtype, -s1, s1),
        "w2": jax.random.uniform(k3, (hidden, llm_dim), dtype, -s2, s2),
        "b2": jax.random.uniform(k4, (llm_dim,), dtype, -s2, s2),
        # get_embed() parameters (zeros, unused in forward):
        "start_boundary": jnp.zeros((1, 1, llm_dim), dtype),
        "end_boundary": jnp.zeros((1, 1, llm_dim), dtype),
    }


def _reference_f32(x, params):
    h = jnp.maximum(x @ params["w1"] + params["b1"], 0.0)
    return h @ params["w2"] + params["b2"]


def _reference_bf16(x, params):
    xb = x.astype(jnp.bfloat16)
    h = jnp.maximum(jnp.dot(xb, params["w1"].astype(jnp.bfloat16),
                            preferred_element_type=jnp.float32) + params["b1"], 0.0)
    return (jnp.dot(h.astype(jnp.bfloat16), params["w2"].astype(jnp.bfloat16),
                    preferred_element_type=jnp.float32) + params["b2"])


if __name__ == "__main__":
    key = jax.random.PRNGKey(0)

    # --- Test 1: tiny shapes, resident-W1 path (grid = (1, 1, 1)) ---
    B, S, mt_dim, llm_dim = 2, 8, 32, 32
    kx, kp, key = jax.random.split(key, 3)
    x = jax.random.normal(kx, (B, S, mt_dim), dtype=jnp.float32)
    params = init_mapping_params(kp, mt_dim, llm_dim)
    prepared = prepare_mapping_weights(params)

    out = jax.block_until_ready(mapping_forward(x, prepared))
    assert out.shape == (B, S, llm_dim)
    assert jnp.allclose(out, _reference_bf16(x, params), atol=5e-3, rtol=5e-3)
    assert jnp.allclose(out, _reference_f32(x, params), atol=5e-2, rtol=5e-2)

    # --- Test 2: force the tiled path (row / llm / hidden tiles, grid = (3, 3, 4)) ---
    B2, S2, mt2, llm2 = 2, 96, 256, 384
    kx2, kp2, key = jax.random.split(key, 3)
    x2 = jax.random.normal(kx2, (B2, S2, mt2), dtype=jnp.float32)
    params2 = init_mapping_params(kp2, mt2, llm2)
    prepared2 = prepare_mapping_weights(params2)

    out2 = jax.block_until_ready(
        mapping_forward(x2, prepared2, tm=64, tn=128, th=128))
    assert out2.shape == (B2, S2, llm2)
    assert jnp.allclose(out2, _reference_bf16(x2, params2), atol=5e-3, rtol=5e-3)
    assert jnp.allclose(out2, _reference_f32(x2, params2), atol=5e-2, rtol=5e-2)

    print("KERNEL_OK")
</pallas_src>

<mosaic_0001>
module attributes {stable_mosaic.version = 11 : i64} {
  func.func @_mlp_kernel(%arg0: i32, %arg1: i32, %arg2: i32, %arg3: memref<16x128xbf16, #tpu.memory_space<vmem>>, %arg4: memref<128x128xbf16, #tpu.memory_space<vmem>>, %arg5: memref<1x128xf32, #tpu.memory_space<vmem>>, %arg6: memref<128x128xbf16, #tpu.memory_space<vmem>>, %arg7: memref<1x128xf32, #tpu.memory_space<vmem>>, %arg8: memref<16x128xf32, #tpu.memory_space<vmem>>, %arg9: memref<1x16x128xbf16, #tpu.memory_space<vmem>>, %arg10: memref<16x128xf32, #tpu.memory_space<vmem>>) attributes {dimension_semantics = [#tpu.dimension_semantics<parallel>, #tpu.dimension_semantics<arbitrary>, #tpu.dimension_semantics<arbitrary>], iteration_bounds = array<i64: 1, 1, 1>, scalar_prefetch = 0 : i64, scratch_operands = 2 : i64, tpu.core_type = #tpu.core_type<tc>, window_params = [{transform_indices = @transform_0, window_bounds = array<i64: 16, 128>}, {pipeline_mode = #tpu.pipeline_mode<synchronous>, transform_indices = @transform_1, window_bounds = array<i64: 128, 128>}, {pipeline_mode = #tpu.pipeline_mode<synchronous>, transform_indices = @transform_2, window_bounds = array<i64: 1, 128>}, {transform_indices = @transform_3, window_bounds = array<i64: 128, 128>}, {transform_indices = @transform_4, window_bounds = array<i64: 1, 128>}, {transform_indices = @transform_5, window_bounds = array<i64: 16, 128>}]} {
    %c0_i32 = arith.constant 0 : i32
    %0 = arith.cmpi eq, %arg2, %c0_i32 : i32
    %1 = arith.extui %0 : i1 to i32
    %c0_i32_0 = arith.constant 0 : i32
    %2 = arith.cmpi ne, %1, %c0_i32_0 : i32
    scf.if %2 {
      %cst_12 = arith.constant 0.000000e+00 : f32
      %17 = vector.broadcast %cst_12 : f32 to vector<16x128xf32>
      %c0_13 = arith.constant 0 : index
      %c0_14 = arith.constant 0 : index
      %18 = vector.load %arg10[%c0_13, %c0_14] : memref<16x128xf32, #tpu.memory_space<vmem>>, vector<16x128xf32>
      tpu.vector_store %arg10[%c0_13, %c0_14], %17 {strides = array<i32>} : memref<16x128xf32, #tpu.memory_space<vmem>>, vector<16x128xf32>,
    } else {
    }
    %c0_i32_1 = arith.constant 0 : i32
    %3 = arith.cmpi eq, %arg1, %c0_i32_1 : i32
    %4 = arith.extui %3 : i1 to i32
    %c0_i32_2 = arith.constant 0 : i32
    %5 = arith.cmpi ne, %4, %c0_i32_2 : i32
    scf.if %5 {
      %c0_12 = arith.constant 0 : index
      %c0_13 = arith.constant 0 : index
      %17 = vector.load %arg3[%c0_12, %c0_13] : memref<16x128xbf16, #tpu.memory_space<vmem>>, vector<16x128xbf16>
      %c0_14 = arith.constant 0 : index
      %c0_15 = arith.constant 0 : index
      %18 = vector.load %arg4[%c0_14, %c0_15] : memref<128x128xbf16, #tpu.memory_space<vmem>>, vector<128x128xbf16>
      %cst_16 = arith.constant dense<0.000000e+00> : vector<16x128xf32>
      %19 = tpu.matmul %17, %18, %cst_16 {dimension_numbers = #tpu.dot_dimension_numbers<[1], [0], [0], [1], [0, 0, 1, 1], [], []>} : vector<16x128xbf16>, vector<128x128xbf16>, vector<16x128xf32> -> vector<16x128xf32>
      %c0_17 = arith.constant 0 : index
      %c0_18 = arith.constant 0 : index
      %20 = vector.load %arg5[%c0_17, %c0_18] : memref<1x128xf32, #tpu.memory_space<vmem>>, vector<1x128xf32>
      %21 = vector.broadcast %20 : vector<1x128xf32> to vector<16x128xf32>
      %22 = arith.addf %19, %21 : vector<16x128xf32>
      %cst_19 = arith.constant 0.000000e+00 : f32
      %23 = vector.broadcast %cst_19 : f32 to vector<16x128xf32>
      %24 = arith.maximumf %22, %23 : vector<16x128xf32>
      %25 = arith.truncf %24 : vector<16x128xf32> to vector<16x128xbf16>
      %26 = arith.index_cast %arg2 : i32 to index
      %c0_20 = arith.constant 0 : index
      %c0_21 = arith.constant 0 : index
      %27 = vector.load %arg9[%26, %c0_20, %c0_21] : memref<1x16x128xbf16, #tpu.memory_space<vmem>>, vector<1x16x128xbf16>
      %28 = vector.shape_cast %27 : vector<1x16x128xbf16> to vector<16x128xbf16>
      %29 = vector.shape_cast %25 : vector<16x128xbf16> to vector<1x16x128xbf16>
      tpu.vector_store %arg9[%26, %c0_20, %c0_21], %29 {strides = array<i32>} : memref<1x16x128xbf16, #tpu.memory_space<vmem>>, vector<1x16x128xbf16>,
    } else {
    }
    %c0 = arith.constant 0 : index
    %c0_3 = arith.constant 0 : index
    %6 = vector.load %arg10[%c0, %c0_3] : memref<16x128xf32, #tpu.memory_space<vmem>>, vector<16x128xf32>
    %7 = arith.index_cast %arg2 : i32 to index
    %c0_4 = arith.constant 0 : index
    %c0_5 = arith.constant 0 : index
    %8 = vector.load %arg9[%7, %c0_4, %c0_5] : memref<1x16x128xbf16, #tpu.memory_space<vmem>>, vector<1x16x128xbf16>
    %9 = vector.shape_cast %8 : vector<1x16x128xbf16> to vector<16x128xbf16>
    %c0_6 = arith.constant 0 : index
    %c0_7 = arith.constant 0 : index
    %10 = vector.load %arg6[%c0_6, %c0_7] : memref<128x128xbf16, #tpu.memory_space<vmem>>, vector<128x128xbf16>
    %cst = arith.constant dense<0.000000e+00> : vector<16x128xf32>
    %11 = tpu.matmul %9, %10, %cst {dimension_numbers = #tpu.dot_dimension_numbers<[1], [0], [0], [1], [0, 0, 1, 1], [], []>} : vector<16x128xbf16>, vector<128x128xbf16>, vector<16x128xf32> -> vector<16x128xf32>
    %12 = arith.addf %6, %11 : vector<16x128xf32>
    %c0_8 = arith.constant 0 : index
    %c0_9 = arith.constant 0 : index
    %13 = vector.load %arg10[%c0_8, %c0_9] : memref<16x128xf32, #tpu.memory_space<vmem>>, vector<16x128xf32>
    tpu.vector_store %arg10[%c0_8, %c0_9], %12 {strides = array<i32>} : memref<16x128xf32, #tpu.memory_space<vmem>>, vector<16x128xf32>,
    %c0_i32_10 = arith.constant 0 : i32
    %14 = arith.cmpi eq, %arg2, %c0_i32_10 : i32
    %15 = arith.extui %14 : i1 to i32
    %c0_i32_11 = arith.constant 0 : i32
    %16 = arith.cmpi ne, %15, %c0_i32_11 : i32
    scf.if %16 {
      %c0_12 = arith.constant 0 : index
      %c0_13 = arith.constant 0 : index
      %17 = vector.load %arg10[%c0_12, %c0_13] : memref<16x128xf32, #tpu.memory_space<vmem>>, vector<16x128xf32>
      %c0_14 = arith.constant 0 : index
      %c0_15 = arith.constant 0 : index
      %18 = vector.load %arg7[%c0_14, %c0_15] : memref<1x128xf32, #tpu.memory_space<vmem>>, vector<1x128xf32>
      %19 = vector.broadcast %18 : vector<1x128xf32> to vector<16x128xf32>
      %20 = arith.addf %17, %19 : vector<16x128xf32>
      %c0_16 = arith.constant 0 : index
      %c0_17 = arith.constant 0 : index
      %21 = vector.load %arg8[%c0_16, %c0_17] : memref<16x128xf32, #tpu.memory_space<vmem>>, vector<16x128xf32>
      tpu.vector_store %arg8[%c0_16, %c0_17], %20 {strides = array<i32>} : memref<16x128xf32, #tpu.memory_space<vmem>>, vector<16x128xf32>,
    } else {
    }
    return
  }
  func.func @transform_0(%arg0: i32, %arg1: i32, %arg2: i32) -> (i32, i32) {
    %c0_i32 = arith.constant 0 : i32
    %c0_i32_0 = arith.constant 0 : i32
    return %arg0, %c0_i32 : i32, i32
  }
  func.func @transform_1(%arg0: i32, %arg1: i32, %arg2: i32) -> (i32, i32) {
    %c0_i32 = arith.constant 0 : i32
    %0 = arith.cmpi eq, %arg1, %c0_i32 : i32
    %c0_i32_0 = arith.constant 0 : i32
    %1 = arith.select %0, %arg2, %c0_i32_0 : i32
    %c0_i32_1 = arith.constant 0 : i32
    %c0_i32_2 = arith.constant 0 : i32
    return %c0_i32_1, %1 : i32, i32
  }
  func.func @transform_2(%arg0: i32, %arg1: i32, %arg2: i32) -> (i32, i32) {
    %c0_i32 = arith.constant 0 : i32
    %0 = arith.cmpi eq, %arg1, %c0_i32 : i32
    %c0_i32_0 = arith.constant 0 : i32
    %1 = arith.select %0, %arg2, %c0_i32_0 : i32
    %c0_i32_1 = arith.constant 0 : i32
    %c0_i32_2 = arith.constant 0 : i32
    return %c0_i32_1, %1 : i32, i32
  }
  func.func @transform_3(%arg0: i32, %arg1: i32, %arg2: i32) -> (i32, i32) {
    %c0_i32 = arith.constant 0 : i32
    return %arg2, %arg1 : i32, i32
  }
  func.func @transform_4(%arg0: i32, %arg1: i32, %arg2: i32) -> (i32, i32) {
    %c0_i32 = arith.constant 0 : i32
    %c0_i32_0 = arith.constant 0 : i32
    return %c0_i32, %arg1 : i32, i32
  }
  func.func @transform_5(%arg0: i32, %arg1: i32, %arg2: i32) -> (i32, i32) {
    %c0_i32 = arith.constant 0 : i32
    return %arg0, %arg1 : i32, i32
  }
}

</mosaic_0001>

<llo_original>
// kernel: tpu_custom_call.1
$region0: #{tpu_custom_call.1}
  #allocation0 [shape = 'u32[]', space=smem, size = 0x4, offset = 0x4, fixed_abs, tag = 'smem constant byte address 0x4 - core index']
  #allocation1 [shape = 'u32[144,128]{1,0:T(1,128)}', space=vmem, size = 0x12000, scoped, tag = 'internal scratch']
  #allocation2 [shape = 'bf16[1,16,128]{2,1,0:T(8,128)(2,1)}', space=vmem, size = 0x1000, scoped, tag = 'scratch operand']
  #allocation3 [shape = 'f32[16,128]{1,0:T(8,128)}', space=vmem, size = 0x2000, scoped, tag = 'scratch operand']
  %s0 = inlined_call_operand.hbm [shape: bf16[16,128], index: 0, kind: input, shape index: {}]
  %s1 = inlined_call_operand.hbm [shape: bf16[128,128], index: 1, kind: input, shape index: {}]
  %s2 = inlined_call_operand.vmem [shape: f32[1,128], index: 2, kind: input, shape index: {}]
  %s3 = inlined_call_operand.hbm [shape: bf16[128,128], index: 3, kind: input, shape index: {}]
  %s4 = inlined_call_operand.vmem [shape: f32[1,128], index: 4, kind: input, shape index: {}]
  %s5 = inlined_call_operand.hbm [shape: f32[16,128], index: 5, kind: output, shape index: {}]
  %s6 = sld [smem:[#allocation0]]
  $region54: #{tpu_custom_call.1} parent=0
    _
  %s8 = ssub.s32 1, %s6
  %s9 = scalar_select 0, %s8, %s6
  $region1: #{tpu_custom_call.1} parent=0
    #allocation4 [shape = 'u8[4096]{0}', space=vmem, size = 0x1000, scoped, tag = 'input window, operand 0, single buffered']
    #allocation5 [shape = 's32[1]{0}', space=sflag, size = 0x4, scoped, tag = 'scoped memory for tpu_custom_call.1']
    #allocation6 [shape = 's32[1]{0}', space=sflag, size = 0x4, scoped, tag = 'scoped memory for tpu_custom_call.1']
    #allocation7 [shape = 'u8[32768]{0}', space=vmem, size = 0x8000, scoped, tag = 'input window, operand 1, single buffered']
    #allocation8 [shape = 's32[1]{0}', space=sflag, size = 0x4, scoped, tag = 'scoped memory for tpu_custom_call.1']
    #allocation9 [shape = 'u8[32768]{0}', space=vmem, size = 0x8000, scoped, tag = 'input window, operand 3, single buffered']
    #allocation10 [shape = 'u8[8192]{0}', space=vmem, size = 0x2000, scoped, tag = 'output window, operand 0, single buffered']
    %10 = vsyncpa [#allocation5], 0
    %11 = vsyncpa [#allocation8], 0
    %12 = vsyncpa [#allocation6], 0
    // Predicated region
    $region2: #{tpu_custom_call.1} parent=1 // pred_check
      _
    $region3: #{tpu_custom_call.1} parent=1 // pred_check_branch
      %14 = sbr.rel (0) target = $region5
    $region4: #{tpu_custom_call.1} parent=1 // pred_region
      %s16 = ssub.s32 128, 128
      %17 = vsyncadd [#allocation5], %s16
      %s18 = sshll.u32 [#allocation4], 4
      %s19 = int_to_ptr.vmem [resolvable:$true] %s18
      %24 = dma.hbm_to_vmem [thread:$0]  %s0, 128, %s19, [#allocation5], 64, 64, 4
    $region5: #{tpu_custom_call.1} parent=1 // pred_fallthru
      _
    // Predicated region
    $region6: #{tpu_custom_call.1} parent=1 // pred_check
      _
    $region7: #{tpu_custom_call.1} parent=1 // pred_check_branch
      %26 = sbr.rel (0) target = $region9
    $region8: #{tpu_custom_call.1} parent=1 // pred_region
      %p27 = scmp.eq.s32.totalorder 0, 0
      %s28 = scalar_select %p27, 0, 0
      %s30 = ssub.s32 1024, 1024
      %31 = vsyncadd [#allocation8], %s30
      %s32 = smul.addr %s28, 64
      %s33 = scalar_lea.hbm %s1, %s32
      %s34 = sshll.u32 [#allocation7], 4
      %s35 = int_to_ptr.vmem [resolvable:$true] %s34
      %40 = dma.hbm_to_vmem [thread:$0]  %s33, 1024, %s35, [#allocation8], 64, 64, 4
    $region9: #{tpu_custom_call.1} parent=1 // pred_fallthru
      _
    // Predicated region
    $region10: #{tpu_custom_call.1} parent=1 // pred_check
      _
    $region11: #{tpu_custom_call.1} parent=1 // pred_check_branch
      %42 = sbr.rel (0) target = $region13
    $region12: #{tpu_custom_call.1} parent=1 // pred_region
      %p43 = scmp.eq.s32.totalorder 0, 0
      %s44 = scalar_select %p43, 0, 0
      %p45 = scmp.lt.s32.totalorder %s44, 0
      %s46 = scalar_select %p45, %s44, 0
      %s47 = scalar_lea.vmem %s2, %s46
      %p48 = scmp.eq.s32.totalorder 0, 0
      %s49 = scalar_select %p48, 0, 0
    $region13: #{tpu_custom_call.1} parent=1 // pred_fallthru
      _
    // Predicated region
    $region14: #{tpu_custom_call.1} parent=1 // pred_check
      _
    $region15: #{tpu_custom_call.1} parent=1 // pred_check_branch
      %51 = sbr.rel (0) target = $region17
    $region16: #{tpu_custom_call.1} parent=1 // pred_region
      %s53 = ssub.s32 1024, 1024
      %54 = vsyncadd [#allocation8], %s53
      %s55 = sshll.u32 [#allocation9], 4
      %s56 = int_to_ptr.vmem [resolvable:$true] %s55
      %61 = dma.hbm_to_vmem [thread:$0]  %s3, 1024, %s56, [#allocation8], 64, 64, 4
    $region17: #{tpu_custom_call.1} parent=1 // pred_fallthru
      _
    // Predicated region
    $region18: #{tpu_custom_call.1} parent=1 // pred_check
      _
    $region19: #{tpu_custom_call.1} parent=1 // pred_check_branch
      %63 = sbr.rel (0) target = $region21
    $region20: #{tpu_custom_call.1} parent=1 // pred_region
      _
    $region21: #{tpu_custom_call.1} parent=1 // pred_fallthru
      _
    // Predicated region
    $region22: #{tpu_custom_call.1} parent=1 // pred_check
      _
    $region23: #{tpu_custom_call.1} parent=1 // pred_check_branch
      %65 = sbr.rel (0) target = $region25
    $region24: #{tpu_custom_call.1} parent=1 // pred_region
      %66 = dma.done [#allocation5], 128
    $region25: #{tpu_custom_call.1} parent=1 // pred_fallthru
      _
    // Predicated region
    $region26: #{tpu_custom_call.1} parent=1 // pred_check
      _
    $region27: #{tpu_custom_call.1} parent=1 // pred_check_branch
      %68 = sbr.rel (0) target = $region29
    $region28: #{tpu_custom_call.1} parent=1 // pred_region
      %69 = dma.done [#allocation8], 1024
    $region29: #{tpu_custom_call.1} parent=1 // pred_fallthru
      _
    // Predicated region
    $region30: #{tpu_custom_call.1} parent=1 // pred_check
      _
    $region31: #{tpu_custom_call.1} parent=1 // pred_check_branch
      %71 = sbr.rel (0) target = $region33
    $region32: #{tpu_custom_call.1} parent=1 // pred_region
      %72 = dma.done [#allocation8], 1024
    $region33: #{tpu_custom_call.1} parent=1 // pred_fallthru
      _
    %p73 = scmp.eq.s32.totalorder 0, 0
    %s74 = scalar_select %p73, 0, 0
    %p75 = scmp.lt.s32.totalorder %s74, 0
    %s76 = scalar_select %p75, %s74, 0
    %s77 = scalar_lea.vmem %s2, %s76
    %p78 = scmp.eq.s32.totalorder 0, 0
    %s79 = scalar_select %p78, 0, 0
    %p80 = scmp.eq.s32.totalorder 0, 0
    %s81 = scalar_select %p80, 0, 0
    %p82 = scmp.lt.s32.totalorder %s81, 0
    %s83 = scalar_select %p82, %s81, 0
    %s84 = scalar_lea.vmem %s2, %s83
    %p85 = scmp.eq.s32.totalorder 0, 0
    %s86 = scalar_select %p85, 0, 0
    %p88 = scmp.eq.s32.totalorder 0, 0
    // Predicated region
    $region34: #{tpu_custom_call.1} parent=1 // pred_check
      %p89 = pneg %p88
    $region35: #{tpu_custom_call.1} parent=1 // pred_check_branch
      %91 = sbr.rel (%p89) target = $region37
    $region36: #{tpu_custom_call.1} parent=1 // pred_region
      %92 = vst [vmem:[#allocation3] sm:$0xff] 0.0
      %93 = vst [vmem:[#allocation3 + $0x8] sm:$0xff] 0.0
    $region37: #{tpu_custom_call.1} parent=1 // pred_fallthru
      _
    %p94 = scmp.eq.s32.totalorder 0, 0
    // Predicated region
    $region38: #{tpu_custom_call.1} parent=1 // pred_check
      %p95 = pneg %p94
    $region39: #{tpu_custom_call.1} parent=1 // pred_check_branch
      %97 = sbr.rel (%p95) target = $region41
    $region40: #{tpu_custom_call.1} parent=1 // pred_region
      %v98 = vld [vmem:[#allocation4] sm:$0xf]
      %v99 = vld [vmem:[#allocation4 + $0x4] sm:$0xf]
      %v100 = vld [vmem:[#allocation7] sm:$0xf]
      %v101 = vld [vmem:[#allocation7 + $0x4] sm:$0xf]
      %v102 = vld [vmem:[#allocation7 + $0x8] sm:$0xf]
      %v103 = vld [vmem:[#allocation7 + $0xc] sm:$0xf]
      %v104 = vld [vmem:[#allocation7 + $0x10] sm:$0xf]
      %v105 = vld [vmem:[#allocation7 + $0x14] sm:$0xf]
      %v106 = vld [vmem:[#allocation7 + $0x18] sm:$0xf]
      %v107 = vld [vmem:[#allocation7 + $0x1c] sm:$0xf]
      %v108 = vld [vmem:[#allocation7 + $0x20] sm:$0xf]
      %v109 = vld [vmem:[#allocation7 + $0x24] sm:$0xf]
      %v110 = vld [vmem:[#allocation7 + $0x28] sm:$0xf]
      %v111 = vld [vmem:[#allocation7 + $0x2c] sm:$0xf]
      %v112 = vld [vmem:[#allocation7 + $0x30] sm:$0xf]
      %v113 = vld [vmem:[#allocation7 + $0x34] sm:$0xf]
      %v114 = vld [vmem:[#allocation7 + $0x38] sm:$0xf]
      %v115 = vld [vmem:[#allocation7 + $0x3c] sm:$0xf]
      %v116 = vld [vmem:[%s84] sm:$0x1]
      %v118 = vlaneseq
      %v119 = vshrl.u32 %v118, 7
      %v120 = vsub.s32 0, %v119
      %v121 = vrot.slane %v116, %v120
      %v125 = vunpack.c.l.b16 %v98
      %v126 = vunpack.c.l.b16 %v99
      %v127 = vpack.c.b16 %v126, %v125
      %v145 = vunpack.c.l.b16 %v100
      %v146 = vunpack.c.l.b16 %v101
      %v147 = vunpack.c.l.b16 %v102
      %v148 = vunpack.c.l.b16 %v103
      %v149 = vunpack.c.l.b16 %v104
      %v150 = vunpack.c.l.b16 %v105
      %v151 = vunpack.c.l.b16 %v106
      %v152 = vunpack.c.l.b16 %v107
      %v153 = vunpack.c.l.b16 %v108
      %v154 = vunpack.c.l.b16 %v109
      %v155 = vunpack.c.l.b16 %v110
      %v156 = vunpack.c.l.b16 %v111
      %v157 = vunpack.c.l.b16 %v112
      %v158 = vunpack.c.l.b16 %v113
      %v159 = vunpack.c.l.b16 %v114
      %v160 = vunpack.c.l.b16 %v115
      %v161 = vpack.c.b16 %v146, %v145
      %v162 = vpack.c.b16 %v148, %v147
      %v163 = vpack.c.b16 %v150, %v149
      %v164 = vpack.c.b16 %v152, %v151
      %v165 = vpack.c.b16 %v154, %v153
      %v166 = vpack.c.b16 %v156, %v155
      %v167 = vpack.c.b16 %v158, %v157
      %v168 = vpack.c.b16 %v160, %v159
      %177 = vmatprep.subr.bf16.mxu0 0
      %178 = vmatpush1.bf16.msra.mxu0 %v168
      %179 = vmatprep.subr.bf16.mxu0 0
      %180 = vmatpush1.bf16.msra.mxu0 %v167
      %181 = vmatprep.subr.bf16.mxu0 0
      %182 = vmatpush1.bf16.msra.mxu0 %v166
      %183 = vmatprep.subr.bf16.mxu0 0
      %184 = vmatpush1.bf16.msra.mxu0 %v165
      %185 = vmatprep.subr.bf16.mxu0 0
      %186 = vmatpush1.bf16.msra.mxu0 %v164
      %187 = vmatprep.subr.bf16.mxu0 0
      %188 = vmatpush1.bf16.msra.mxu0 %v163
      %189 = vmatprep.subr.bf16.mxu0 0
      %190 = vmatpush1.bf16.msra.mxu0 %v162
      %191 = vmatprep.subr.bf16.mxu0 0
      %192 = vmatpush1.bf16.msra.mxu0 %v161
      %193 = vmatprep.subr.bf16.mxu0 0
      %194 = vmatpush2.bf16.msra.mxu0 0
      %195 = vmatprep.subr.bf16.mxu0 0
      %196 = vmatpush2.bf16.msra.mxu0 0
      %197 = vmatprep.subr.bf16.mxu0 0
      %198 = vmatpush2.bf16.msra.mxu0 0
      %199 = vmatprep.subr.bf16.mxu0 0
      %200 = vmatpush2.bf16.msra.mxu0 0
      %201 = vmatprep.subr.bf16.mxu0 0
      %202 = vmatpush2.bf16.msra.mxu0 0
      %203 = vmatprep.subr.bf16.mxu0 0
      %204 = vmatpush2.bf16.msra.mxu0 0
      %205 = vmatprep.subr.bf16.mxu0 0
      %206 = vmatpush2.bf16.msra.mxu0 0
      %207 = vmatprep.subr.bf16.mxu0 0
      %208 = vmatpush2.bf16.msra.mxu0 0
      %209 = vmatprep.mubr.bf16.mxu0 0
      %210 = vmatmul.mubr.bf16.gmra.mxu0 %v127
      %v211 = vpop.f32.mrf.mxu0
      %v212 = vadd.f32 %v121, %v211
      %v213 = vpop.f32.mrf.mxu0
      %v214 = vpop.f32.mrf.mxu0
      %v215 = vadd.f32 %v121, %v214
      %v216 = vpop.f32.mrf.mxu0
      %217 = vdwg.mxu0
      %v218 = vmax.f32 %v212, 0.0
      %v219 = vmax.f32 %v215, 0.0
      %v220 = vpack.c.bf16 %v219, %v218
      %v222 = vunpack.c.l.b16 %v220
      %v223 = vunpack.c.h.b16 %v220
      %v224 = vpack.c.b16 %v222, %v222
      %v225 = vpack.c.b16 %v223, %v223
      %s228 = smul.u32 0, 2
      %s229 = smul.addr %s228, 4
      %s230 = scalar_lea.vmem [#allocation2], %s229
      %231 = vst [vmem:[%s230] sm:$0xf] %v224
      %232 = vst [vmem:[%s230 + $0x4] sm:$0xf] %v225
    $region41: #{tpu_custom_call.1} parent=1 // pred_fallthru
      _
    %v233 = vld [vmem:[#allocation3] sm:$0xff]
    %v234 = vld [vmem:[#allocation3 + $0x8] sm:$0xff]
    %s235 = smul.u32 0, 2
    %s236 = smul.addr %s235, 4
    %s237 = scalar_lea.vmem [#allocation2], %s236
    %v238 = vld [vmem:[%s237] sm:$0xf]
    %v239 = vld [vmem:[%s237 + $0x4] sm:$0xf]
    %v240 = vld [vmem:[#allocation9] sm:$0xf]
    %v241 = vld [vmem:[#allocation9 + $0x4] sm:$0xf]
    %v242 = vld [vmem:[#allocation9 + $0x8] sm:$0xf]
    %v243 = vld [vmem:[#allocation9 + $0xc] sm:$0xf]
    %v244 = vld [vmem:[#allocation9 + $0x10] sm:$0xf]
    %v245 = vld [vmem:[#allocation9 + $0x14] sm:$0xf]
    %v246 = vld [vmem:[#allocation9 + $0x18] sm:$0xf]
    %v247 = vld [vmem:[#allocation9 + $0x1c] sm:$0xf]
    %v248 = vld [vmem:[#allocation9 + $0x20] sm:$0xf]
    %v249 = vld [vmem:[#allocation9 + $0x24] sm:$0xf]
    %v250 = vld [vmem:[#allocation9 + $0x28] sm:$0xf]
    %v251 = vld [vmem:[#allocation9 + $0x2c] sm:$0xf]
    %v252 = vld [vmem:[#allocation9 + $0x30] sm:$0xf]
    %v253 = vld [vmem:[#allocation9 + $0x34] sm:$0xf]
    %v254 = vld [vmem:[#allocation9 + $0x38] sm:$0xf]
    %v255 = vld [vmem:[#allocation9 + $0x3c] sm:$0xf]
    %v258 = vunpack.c.l.b16 %v238
    %v259 = vunpack.c.l.b16 %v239
    %v260 = vpack.c.b16 %v259, %v258
    %v278 = vunpack.c.l.b16 %v240
    %v279 = vunpack.c.l.b16 %v241
    %v280 = vunpack.c.l.b16 %v242
    %v281 = vunpack.c.l.b16 %v243
    %v282 = vunpack.c.l.b16 %v244
    %v283 = vunpack.c.l.b16 %v245
    %v284 = vunpack.c.l.b16 %v246
    %v285 = vunpack.c.l.b16 %v247
    %v286 = vunpack.c.l.b16 %v248
    %v287 = vunpack.c.l.b16 %v249
    %v288 = vunpack.c.l.b16 %v250
    %v289 = vunpack.c.l.b16 %v251
    %v290 = vunpack.c.l.b16 %v252
    %v291 = vunpack.c.l.b16 %v253
    %v292 = vunpack.c.l.b16 %v254
    %v293 = vunpack.c.l.b16 %v255
    %v294 = vpack.c.b16 %v279, %v278
    %v295 = vpack.c.b16 %v281, %v280
    %v296 = vpack.c.b16 %v283, %v282
    %v297 = vpack.c.b16 %v285, %v284
    %v298 = vpack.c.b16 %v287, %v286
    %v299 = vpack.c.b16 %v289, %v288
    %v300 = vpack.c.b16 %v291, %v290
    %v301 = vpack.c.b16 %v293, %v292
    %310 = vmatprep.subr.bf16.mxu0 0
    %311 = vmatpush1.bf16.msra.mxu0 %v301
    %312 = vmatprep.subr.bf16.mxu0 0
    %313 = vmatpush1.bf16.msra.mxu0 %v300
    %314 = vmatprep.subr.bf16.mxu0 0
    %315 = vmatpush1.bf16.msra.mxu0 %v299
    %316 = vmatprep.subr.bf16.mxu0 0
    %317 = vmatpush1.bf16.msra.mxu0 %v298
    %318 = vmatprep.subr.bf16.mxu0 0
    %319 = vmatpush1.bf16.msra.mxu0 %v297
    %320 = vmatprep.subr.bf16.mxu0 0
    %321 = vmatpush1.bf16.msra.mxu0 %v296
    %322 = vmatprep.subr.bf16.mxu0 0
    %323 = vmatpush1.bf16.msra.mxu0 %v295
    %324 = vmatprep.subr.bf16.mxu0 0
    %325 = vmatpush1.bf16.msra.mxu0 %v294
    %326 = vmatprep.subr.bf16.mxu0 0
    %327 = vmatpush2.bf16.msra.mxu0 0
    %328 = vmatprep.subr.bf16.mxu0 0
    %329 = vmatpush2.bf16.msra.mxu0 0
    %330 = vmatprep.subr.bf16.mxu0 0
    %331 = vmatpush2.bf16.msra.mxu0 0
    %332 = vmatprep.subr.bf16.mxu0 0
    %333 = vmatpush2.bf16.msra.mxu0 0
    %334 = vmatprep.subr.bf16.mxu0 0
    %335 = vmatpush2.bf16.msra.mxu0 0
    %336 = vmatprep.subr.bf16.mxu0 0
    %337 = vmatpush2.bf16.msra.mxu0 0
    %338 = vmatprep.subr.bf16.mxu0 0
    %339 = vmatpush2.bf16.msra.mxu0 0
    %340 = vmatprep.subr.bf16.mxu0 0
    %341 = vmatpush2.bf16.msra.mxu0 0
    %342 = vmatprep.mubr.bf16.mxu0 0
    %343 = vmatmul.mubr.bf16.gmra.mxu0 %v260
    %v344 = vpop.f32.mrf.mxu0
    %v345 = vadd.f32 0.0, %v344
    %v346 = vpop.f32.mrf.mxu0
    %v347 = vpop.f32.mrf.mxu0
    %v348 = vadd.f32 0.0, %v347
    %v349 = vpop.f32.mrf.mxu0
    %350 = vdwg.mxu0
    %v351 = vadd.f32 %v233, %v345
    %v352 = vadd.f32 %v234, %v348
    %353 = vst [vmem:[#allocation3] sm:$0xff] %v351
    %354 = vst [vmem:[#allocation3 + $0x8] sm:$0xff] %v352
    // Predicated region
    $region42: #{tpu_custom_call.1} parent=1 // pred_check
      %p355 = pneg %p88
    $region43: #{tpu_custom_call.1} parent=1 // pred_check_branch
      %357 = sbr.rel (%p355) target = $region45
    $region44: #{tpu_custom_call.1} parent=1 // pred_region
      %v358 = vld [vmem:[#allocation3] sm:$0xff]
      %v359 = vld [vmem:[#allocation3 + $0x8] sm:$0xff]
      %v360 = vld [vmem:[%s4] sm:$0x1]
      %v362 = vlaneseq
      %v363 = vshrl.u32 %v362, 7
      %v364 = vsub.s32 0, %v363
      %v365 = vrot.slane %v360, %v364
      %v367 = vadd.f32 %v358, %v365
      %v368 = vadd.f32 %v359, %v365
      %369 = vst [vmem:[#allocation10] sm:$0xff] %v367
      %370 = vst [vmem:[#allocation10 + $0x8] sm:$0xff] %v368
    $region45: #{tpu_custom_call.1} parent=1 // pred_fallthru
      _
    // Predicated region
    $region46: #{tpu_custom_call.1} parent=1 // pred_check
      _
    $region47: #{tpu_custom_call.1} parent=1 // pred_check_branch
      %372 = sbr.rel (0) target = $region49
    $region48: #{tpu_custom_call.1} parent=1 // pred_region
      %s374 = ssub.s32 256, 256
      %375 = vsyncadd [#allocation6], %s374
      %s376 = sshll.u32 [#allocation10], 4
      %s377 = int_to_ptr.vmem [resolvable:$true] %s376
      %382 = dma.vmem_to_hbm [thread:$0]  %s377, 256, %s5, [#allocation6], 128, 128, 8
    $region49: #{tpu_custom_call.1} parent=1 // pred_fallthru
      _
    // Predicated region
    $region50: #{tpu_custom_call.1} parent=1 // pred_check
      _
    $region51: #{tpu_custom_call.1} parent=1 // pred_check_branch
      %384 = sbr.rel (0) target = $region53
    $region52: #{tpu_custom_call.1} parent=1 // pred_region
      %385 = dma.done [#allocation6], 256
    $region53: #{tpu_custom_call.1} parent=1 // pred_fallthru
      _
    %386 = vsyncpa [#allocation5], 1
    %387 = vsyncpa [#allocation8], 1
    %388 = vsyncpa [#allocation6], 1

</llo_original>
